<compile_context>
chip_gen: v7x
topology: tpu7x:2x2x1
jax: 0.10.0
libtpu: 0.0.40
codegen_flags: <defaults>
</compile_context>

<pallas_src>
import functools

import jax
import jax.numpy as jnp
from jax.experimental import pallas as pl
from jax.experimental.pallas import tpu as pltpu

G_DIM = 8
H_DIM = 16
INTERMEDIATE_LAYER_DIM = 16
Z_DIM = 16

# Row-tiling configuration.
_SINGLE_BLOCK_MAX_ROWS = 1024   # below this, one full-array block (no pipeline machinery)
_TILE_ROWS = 4096               # multiple of 8; ~0.8 MiB/step of I/O, safe for v7x 64 MiB VMEM


def _combiner_kernel(h_ref, z_ref, w1h_ref, w1z_ref, b1_ref, w2_ref, b2_ref,
                     g_ref, *, activation):
    # Layer 1: Linear(hidden_dim + latent_dim -> inter_dim), concat folded into
    # two matmuls, f32 accumulation on the MXU.
    pre = (
        jnp.dot(h_ref[...], w1h_ref[...], preferred_element_type=jnp.float32)
        + jnp.dot(z_ref[...], w1z_ref[...], preferred_element_type=jnp.float32)
        + b1_ref[...]
    )
    if activation == "tanh":
        hid = jnp.tanh(pre)          # EUP
    else:  # "relu"
        hid = jnp.maximum(pre, 0.0)  # VPU
    # Layer 2: Linear(inter_dim -> output_dim)
    g = jnp.dot(hid, w2_ref[...], preferred_element_type=jnp.float32) + b2_ref[...]
    g_ref[...] = g.astype(g_ref.dtype)


def combiner_mlp(h, z, w1, b1, w2, b2, *, activation="tanh"):
    """CombinerMLP forward.

    h: (batch, hidden_dim), z: (batch, latent_dim)
    w1: (hidden_dim + latent_dim, inter_dim), b1: (inter_dim,)
    w2: (inter_dim, output_dim),              b2: (output_dim,)
    Returns g: (batch, output_dim).
    """
    if activation not in ("tanh", "relu"):
        raise ValueError(f"Activation function {activation} not supported.")

    batch, hidden_dim = h.shape
    _, latent_dim = z.shape
    inter_dim = w1.shape[1]
    out_dim = w2.shape[1]
    assert w1.shape[0] == hidden_dim + latent_dim
    assert w2.shape[0] == inter_dim

    # Split W1 so cat(h, z) @ W1 == h @ W1_h + z @ W1_z (cat order is (h, z)).
    w1h = w1[:hidden_dim]
    w1z = w1[hidden_dim:]
    b1_2d = b1.reshape(1, inter_dim)
    b2_2d = b2.reshape(1, out_dim)

    kernel = functools.partial(_combiner_kernel, activation=activation)

    def run(h_in, z_in, n_rows, tile_rows, semantics):
        cost = pl.CostEstimate(
            flops=2 * n_rows * (hidden_dim * inter_dim
                                + latent_dim * inter_dim
                                + inter_dim * out_dim),
            transcendentals=n_rows * inter_dim if activation == "tanh" else 0,
            bytes_accessed=4 * (n_rows * (hidden_dim + latent_dim + out_dim)
                                + w1.size + b1.size + w2.size + b2.size),
        )
        return pl.pallas_call(
            kernel,
            out_shape=jax.ShapeDtypeStruct((n_rows, out_dim), h.dtype),
            grid=(n_rows // tile_rows,),
            in_specs=[
                pl.BlockSpec((tile_rows, hidden_dim), lambda i: (i, 0)),
                pl.BlockSpec((tile_rows, latent_dim), lambda i: (i, 0)),
                # Weights/biases: constant block index -> loaded once, resident.
                pl.BlockSpec((hidden_dim, inter_dim), lambda i: (0, 0)),
                pl.BlockSpec((latent_dim, inter_dim), lambda i: (0, 0)),
                pl.BlockSpec((1, inter_dim), lambda i: (0, 0)),
                pl.BlockSpec((inter_dim, out_dim), lambda i: (0, 0)),
                pl.BlockSpec((1, out_dim), lambda i: (0, 0)),
            ],
            out_specs=pl.BlockSpec((tile_rows, out_dim), lambda i: (i, 0)),
            compiler_params=pltpu.CompilerParams(dimension_semantics=semantics),
            cost_estimate=cost,
        )(h_in, z_in, w1h, w1z, b1_2d, w2, b2_2d)

    if batch <= _SINGLE_BLOCK_MAX_ROWS:
        # Tiny input: single full-array block (always satisfies the (8,128) rule).
        g = run(h, z, batch, batch, ("arbitrary",))
    else:
        # Large input: pad rows to a multiple of TM, tile, slice back.
        n_pad = (-batch) % _TILE_ROWS
        h_p = jnp.pad(h, ((0, n_pad), (0, 0))) if n_pad else h
        z_p = jnp.pad(z, ((0, n_pad), (0, 0))) if n_pad else z
        g = run(h_p, z_p, batch + n_pad, _TILE_ROWS, ("parallel",))
        g = g[:batch]
    return g


def init_params(key, latent_dim=Z_DIM, hidden_dim=H_DIM, output_dim=G_DIM,
                inter_dim=INTERMEDIATE_LAYER_DIM):
    """Deterministic init mimicking nn.Linear default (uniform +/- 1/sqrt(fan_in)).
    Weights stored as (in_features, out_features)."""
    k1, k2, k3, k4 = jax.random.split(key, 4)
    in_dim = latent_dim + hidden_dim
    bound1 = 1.0 / jnp.sqrt(in_dim)
    bound2 = 1.0 / jnp.sqrt(inter_dim)
    w1 = jax.random.uniform(k1, (in_dim, inter_dim), jnp.float32, -bound1, bound1)
    b1 = jax.random.uniform(k2, (inter_dim,), jnp.float32, -bound1, bound1)
    w2 = jax.random.uniform(k3, (inter_dim, output_dim), jnp.float32, -bound2, bound2)
    b2 = jax.random.uniform(k4, (output_dim,), jnp.float32, -bound2, bound2)
    return w1, b1, w2, b2


def _reference(h, z, w1, b1, w2, b2, activation="tanh"):
    x = jnp.concatenate([h, z], axis=-1)
    pre = x @ w1 + b1
    hid = jnp.tanh(pre) if activation == "tanh" else jnp.maximum(pre, 0.0)
    return hid @ w2 + b2


if __name__ == "__main__":
    key = jax.random.PRNGKey(0)
    k_params, k_h, k_z, k_h2, k_z2 = jax.random.split(key, 5)

    batch, hidden_dim, latent_dim, output_dim = 2, H_DIM, Z_DIM, G_DIM
    w1, b1, w2, b2 = init_params(k_params, latent_dim, hidden_dim, output_dim,
                                 INTERMEDIATE_LAYER_DIM)

    # Small path (matches the module's sequential use: (batch, hidden)/(batch, latent)).
    h = jax.random.normal(k_h, (batch, hidden_dim), jnp.float32)
    z = jax.random.normal(k_z, (batch, latent_dim), jnp.float32)
    g = combiner_mlp(h, z, w1, b1, w2, b2)
    jax.block_until_ready(g)
    g_ref = _reference(h, z, w1, b1, w2, b2)
    assert g.shape == (batch, output_dim)
    assert jnp.allclose(g, g_ref, atol=1e-5)

    # Tiled (large-batch) path smoke test: exercises the row grid + padding.
    big_batch = 10000
    h_big = jax.random.normal(k_h2, (big_batch, hidden_dim), jnp.float32)
    z_big = jax.random.normal(k_z2, (big_batch, latent_dim), jnp.float32)
    g_big = combiner_mlp(h_big, z_big, w1, b1, w2, b2)
    jax.block_until_ready(g_big)
    g_big_ref = _reference(h_big, z_big, w1, b1, w2, b2)
    assert g_big.shape == (big_batch, output_dim)
    assert jnp.allclose(g_big, g_big_ref, atol=1e-5)

    print("KERNEL_OK")
</pallas_src>

<mosaic_0001>
module attributes {stable_mosaic.version = 11 : i64} {
  func.func @_combiner_kernel(%arg0: i32, %arg1: memref<2x16xf32, #tpu.memory_space<vmem>>, %arg2: memref<2x16xf32, #tpu.memory_space<vmem>>, %arg3: memref<16x16xf32, #tpu.memory_space<vmem>>, %arg4: memref<16x16xf32, #tpu.memory_space<vmem>>, %arg5: memref<1x16xf32, #tpu.memory_space<vmem>>, %arg6: memref<16x8xf32, #tpu.memory_space<vmem>>, %arg7: memref<1x8xf32, #tpu.memory_space<vmem>>, %arg8: memref<2x8xf32, #tpu.memory_space<vmem>>) attributes {dimension_semantics = [#tpu.dimension_semantics<arbitrary>], iteration_bounds = array<i64: 1>, scalar_prefetch = 0 : i64, scratch_operands = 0 : i64, tpu.core_type = #tpu.core_type<tc>, window_params = [{transform_indices = @transform_0, window_bounds = array<i64: 2, 16>}, {transform_indices = @transform_1, window_bounds = array<i64: 2, 16>}, {pipeline_mode = #tpu.pipeline_mode<synchronous>, transform_indices = @transform_2, window_bounds = array<i64: 16, 16>}, {pipeline_mode = #tpu.pipeline_mode<synchronous>, transform_indices = @transform_3, window_bounds = array<i64: 16, 16>}, {pipeline_mode = #tpu.pipeline_mode<synchronous>, transform_indices = @transform_4, window_bounds = array<i64: 1, 16>}, {pipeline_mode = #tpu.pipeline_mode<synchronous>, transform_indices = @transform_5, window_bounds = array<i64: 16, 8>}, {pipeline_mode = #tpu.pipeline_mode<synchronous>, transform_indices = @transform_6, window_bounds = array<i64: 1, 8>}, {transform_indices = @transform_7, window_bounds = array<i64: 2, 8>}]} {
    %c0 = arith.constant 0 : index
    %c0_0 = arith.constant 0 : index
    %0 = vector.load %arg1[%c0, %c0_0] : memref<2x16xf32, #tpu.memory_space<vmem>>, vector<2x16xf32>
    %c0_1 = arith.constant 0 : index
    %c0_2 = arith.constant 0 : index
    %1 = vector.load %arg3[%c0_1, %c0_2] : memref<16x16xf32, #tpu.memory_space<vmem>>, vector<16x16xf32>
    %cst = arith.constant dense<0.000000e+00> : vector<2x16xf32>
    %2 = tpu.matmul %0, %1, %cst {dimension_numbers = #tpu.dot_dimension_numbers<[1], [0], [0], [1], [0, 0, 1, 1], [], []>} : vector<2x16xf32>, vector<16x16xf32>, vector<2x16xf32> -> vector<2x16xf32>
    %c0_3 = arith.constant 0 : index
    %c0_4 = arith.constant 0 : index
    %3 = vector.load %arg2[%c0_3, %c0_4] : memref<2x16xf32, #tpu.memory_space<vmem>>, vector<2x16xf32>
    %c0_5 = arith.constant 0 : index
    %c0_6 = arith.constant 0 : index
    %4 = vector.load %arg4[%c0_5, %c0_6] : memref<16x16xf32, #tpu.memory_space<vmem>>, vector<16x16xf32>
    %cst_7 = arith.constant dense<0.000000e+00> : vector<2x16xf32>
    %5 = tpu.matmul %3, %4, %cst_7 {dimension_numbers = #tpu.dot_dimension_numbers<[1], [0], [0], [1], [0, 0, 1, 1], [], []>} : vector<2x16xf32>, vector<16x16xf32>, vector<2x16xf32> -> vector<2x16xf32>
    %6 = arith.addf %2, %5 : vector<2x16xf32>
    %c0_8 = arith.constant 0 : index
    %c0_9 = arith.constant 0 : index
    %7 = vector.load %arg5[%c0_8, %c0_9] : memref<1x16xf32, #tpu.memory_space<vmem>>, vector<1x16xf32>
    %8 = vector.broadcast %7 : vector<1x16xf32> to vector<2x16xf32>
    %9 = arith.addf %6, %8 : vector<2x16xf32>
    %10 = math.tanh %9 : vector<2x16xf32>
    %c0_10 = arith.constant 0 : index
    %c0_11 = arith.constant 0 : index
    %11 = vector.load %arg6[%c0_10, %c0_11] : memref<16x8xf32, #tpu.memory_space<vmem>>, vector<16x8xf32>
    %cst_12 = arith.constant dense<0.000000e+00> : vector<2x8xf32>
    %12 = tpu.matmul %10, %11, %cst_12 {dimension_numbers = #tpu.dot_dimension_numbers<[1], [0], [0], [1], [0, 0, 1, 1], [], []>} : vector<2x16xf32>, vector<16x8xf32>, vector<2x8xf32> -> vector<2x8xf32>
    %c0_13 = arith.constant 0 : index
    %c0_14 = arith.constant 0 : index
    %13 = vector.load %arg7[%c0_13, %c0_14] : memref<1x8xf32, #tpu.memory_space<vmem>>, vector<1x8xf32>
    %14 = vector.broadcast %13 : vector<1x8xf32> to vector<2x8xf32>
    %15 = arith.addf %12, %14 : vector<2x8xf32>
    %c0_15 = arith.constant 0 : index
    %c0_16 = arith.constant 0 : index
    %16 = vector.load %arg8[%c0_15, %c0_16] : memref<2x8xf32, #tpu.memory_space<vmem>>, vector<2x8xf32>
    tpu.vector_store %arg8[%c0_15, %c0_16], %15 {strides = array<i32>} : memref<2x8xf32, #tpu.memory_space<vmem>>, vector<2x8xf32>,
    return
  }
  func.func @transform_0(%arg0: i32) -> (i32, i32) {
    %c0_i32 = arith.constant 0 : i32
    %c0_i32_0 = arith.constant 0 : i32
    return %arg0, %c0_i32 : i32, i32
  }
  func.func @transform_1(%arg0: i32) -> (i32, i32) {
    %c0_i32 = arith.constant 0 : i32
    %c0_i32_0 = arith.constant 0 : i32
    return %arg0, %c0_i32 : i32, i32
  }
  func.func @transform_2(%arg0: i32) -> (i32, i32) {
    %c0_i32 = arith.constant 0 : i32
    %c0_i32_0 = arith.constant 0 : i32
    %c0_i32_1 = arith.constant 0 : i32
    return %c0_i32, %c0_i32_0 : i32, i32
  }
  func.func @transform_3(%arg0: i32) -> (i32, i32) {
    %c0_i32 = arith.constant 0 : i32
    %c0_i32_0 = arith.constant 0 : i32
    %c0_i32_1 = arith.constant 0 : i32
    return %c0_i32, %c0_i32_0 : i32, i32
  }
  func.func @transform_4(%arg0: i32) -> (i32, i32) {
    %c0_i32 = arith.constant 0 : i32
    %c0_i32_0 = arith.constant 0 : i32
    %c0_i32_1 = arith.constant 0 : i32
    return %c0_i32, %c0_i32_0 : i32, i32
  }
  func.func @transform_5(%arg0: i32) -> (i32, i32) {
    %c0_i32 = arith.constant 0 : i32
    %c0_i32_0 = arith.constant 0 : i32
    %c0_i32_1 = arith.constant 0 : i32
    return %c0_i32, %c0_i32_0 : i32, i32
  }
  func.func @transform_6(%arg0: i32) -> (i32, i32) {
    %c0_i32 = arith.constant 0 : i32
    %c0_i32_0 = arith.constant 0 : i32
    %c0_i32_1 = arith.constant 0 : i32
    return %c0_i32, %c0_i32_0 : i32, i32
  }
  func.func @transform_7(%arg0: i32) -> (i32, i32) {
    %c0_i32 = arith.constant 0 : i32
    %c0_i32_0 = arith.constant 0 : i32
    return %arg0, %c0_i32 : i32, i32
  }
}

</mosaic_0001>

<llo_original>
// kernel: tpu_custom_call.1
$region0: #{tpu_custom_call.1}
  #allocation0 [shape = 'u32[]', space=smem, size = 0x4, offset = 0x4, fixed_abs, tag = 'smem constant byte address 0x4 - core index']
  #allocation1 [shape = 'u32[144,128]{1,0:T(1,128)}', space=vmem, size = 0x12000, scoped, tag = 'internal scratch']
  %s0 = inlined_call_operand.vmem [shape: f32[2,16], index: 0, kind: input, shape index: {}]
  %s1 = inlined_call_operand.hbm [shape: f32[2,16], index: 1, kind: input, shape index: {}]
  %s2 = inlined_call_operand.vmem [shape: f32[16,16], index: 2, kind: input, shape index: {}]
  %s3 = inlined_call_operand.vmem [shape: f32[16,16], index: 3, kind: input, shape index: {}]
  %s4 = inlined_call_operand.hbm [shape: f32[1,16], index: 4, kind: input, shape index: {}]
  %s5 = inlined_call_operand.vmem [shape: f32[16,8], index: 5, kind: input, shape index: {}]
  %s6 = inlined_call_operand.vmem [shape: f32[1,8], index: 6, kind: input, shape index: {}]
  %s7 = inlined_call_operand.hbm [shape: f32[2,8], index: 7, kind: output, shape index: {}]
  %s8 = sld [smem:[#allocation0]]
  $region46: #{tpu_custom_call.1} parent=0
    _
  %s10 = ssub.s32 1, %s8
  %s11 = scalar_select 0, %s10, %s8
  $region1: #{tpu_custom_call.1} parent=0
    #allocation2 [shape = 'u8[1024]{0}', space=vmem, size = 0x400, scoped, tag = 'input window, operand 1, single buffered']
    #allocation3 [shape = 's32[1]{0}', space=sflag, size = 0x4, scoped, tag = 'scoped memory for tpu_custom_call.1']
    #allocation4 [shape = 's32[1]{0}', space=sflag, size = 0x4, scoped, tag = 'scoped memory for tpu_custom_call.1']
    #allocation5 [shape = 'u8[512]{0}', space=vmem, size = 0x400, scoped, tag = 'input window, operand 4, single buffered']
    #allocation6 [shape = 's32[1]{0}', space=sflag, size = 0x4, scoped, tag = 'scoped memory for tpu_custom_call.1']
    #allocation7 [shape = 'u8[1024]{0}', space=vmem, size = 0x400, scoped, tag = 'output window, operand 0, single buffered']
    %12 = vsyncpa [#allocation3], 0
    %13 = vsyncpa [#allocation6], 0
    %14 = vsyncpa [#allocation4], 0
    // Predicated region
    $region2: #{tpu_custom_call.1} parent=1 // pred_check
      _
    $region3: #{tpu_custom_call.1} parent=1 // pred_check_branch
      %16 = sbr.rel (0) target = $region5
    $region4: #{tpu_custom_call.1} parent=1 // pred_region
      _
    $region5: #{tpu_custom_call.1} parent=1 // pred_fallthru
      _
    // Predicated region
    $region6: #{tpu_custom_call.1} parent=1 // pred_check
      _
    $region7: #{tpu_custom_call.1} parent=1 // pred_check_branch
      %18 = sbr.rel (0) target = $region9
    $region8: #{tpu_custom_call.1} parent=1 // pred_region
      %s20 = ssub.s32 32, 32
      %21 = vsyncadd [#allocation3], %s20
      %s23 = sshll.u32 [#allocation2], 4
      %s24 = int_to_ptr.vmem [resolvable:$true] %s23
      %26 = dma.hbm_to_vmem [thread:$0]  %s1, 32, %s24, [#allocation3]
    $region9: #{tpu_custom_call.1} parent=1 // pred_fallthru
      _
    // Predicated region
    $region10: #{tpu_custom_call.1} parent=1 // pred_check
      _
    $region11: #{tpu_custom_call.1} parent=1 // pred_check_branch
      %28 = sbr.rel (0) target = $region13
    $region12: #{tpu_custom_call.1} parent=1 // pred_region
      _
    $region13: #{tpu_custom_call.1} parent=1 // pred_fallthru
      _
    // Predicated region
    $region14: #{tpu_custom_call.1} parent=1 // pred_check
      _
    $region15: #{tpu_custom_call.1} parent=1 // pred_check_branch
      %30 = sbr.rel (0) target = $region17
    $region16: #{tpu_custom_call.1} parent=1 // pred_region
      _
    $region17: #{tpu_custom_call.1} parent=1 // pred_fallthru
      _
    // Predicated region
    $region18: #{tpu_custom_call.1} parent=1 // pred_check
      _
    $region19: #{tpu_custom_call.1} parent=1 // pred_check_branch
      %32 = sbr.rel (0) target = $region21
    $region20: #{tpu_custom_call.1} parent=1 // pred_region
      %s34 = ssub.s32 16, 16
      %35 = vsyncadd [#allocation6], %s34
      %s37 = sshll.u32 [#allocation5], 4
      %s38 = int_to_ptr.vmem [resolvable:$true] %s37
      %40 = dma.hbm_to_vmem [thread:$0]  %s4, 16, %s38, [#allocation6]
    $region21: #{tpu_custom_call.1} parent=1 // pred_fallthru
      _
    // Predicated region
    $region22: #{tpu_custom_call.1} parent=1 // pred_check
      _
    $region23: #{tpu_custom_call.1} parent=1 // pred_check_branch
      %42 = sbr.rel (0) target = $region25
    $region24: #{tpu_custom_call.1} parent=1 // pred_region
      _
    $region25: #{tpu_custom_call.1} parent=1 // pred_fallthru
      _
    // Predicated region
    $region26: #{tpu_custom_call.1} parent=1 // pred_check
      _
    $region27: #{tpu_custom_call.1} parent=1 // pred_check_branch
      %44 = sbr.rel (0) target = $region29
    $region28: #{tpu_custom_call.1} parent=1 // pred_region
      _
    $region29: #{tpu_custom_call.1} parent=1 // pred_fallthru
      _
    // Predicated region
    $region30: #{tpu_custom_call.1} parent=1 // pred_check
      _
    $region31: #{tpu_custom_call.1} parent=1 // pred_check_branch
      %46 = sbr.rel (0) target = $region33
    $region32: #{tpu_custom_call.1} parent=1 // pred_region
      %47 = dma.done [#allocation3], 32
    $region33: #{tpu_custom_call.1} parent=1 // pred_fallthru
      _
    // Predicated region
    $region34: #{tpu_custom_call.1} parent=1 // pred_check
      _
    $region35: #{tpu_custom_call.1} parent=1 // pred_check_branch
      %49 = sbr.rel (0) target = $region37
    $region36: #{tpu_custom_call.1} parent=1 // pred_region
      %50 = dma.done [#allocation6], 16
    $region37: #{tpu_custom_call.1} parent=1 // pred_fallthru
      _
    %v51 = vld [vmem:[%s0] sm:$0x3]
    %v52 = vld [vmem:[%s2] sm:$0xff]
    %v53 = vld [vmem:[%s2 + $0x8] sm:$0xff]
    %v54 = vld [vmem:[#allocation2] sm:$0x3]
    %v55 = vld [vmem:[%s3] sm:$0xff]
    %v56 = vld [vmem:[%s3 + $0x8] sm:$0xff]
    %vm57 = vcmask 130048
    %v59 = vsel %vm57, %v54, 0
    %61 = vmatprep.subr.mxu0 0.0
    %62 = vmatpush1.msra.mxu0 %v55
    %63 = vmatprep.subr.mxu0 0.0
    %64 = vmatpush1.msra.mxu0 %v56
    %65 = vmatprep.subr.mxu0 0.0
    %66 = vmatpush1.msra.mxu0 0.0
    %67 = vmatprep.subr.mxu0 0.0
    %68 = vmatpush1.msra.mxu0 0.0
    %69 = vmatprep.subr.mxu0 0.0
    %70 = vmatpush1.msra.mxu0 0.0
    %71 = vmatprep.subr.mxu0 0.0
    %72 = vmatpush1.msra.mxu0 0.0
    %73 = vmatprep.subr.mxu0 0.0
    %74 = vmatpush1.msra.mxu0 0.0
    %75 = vmatprep.subr.mxu0 0.0
    %76 = vmatpush1.msra.mxu0 0.0
    %77 = vmatprep.subr.mxu0 0.0
    %78 = vmatpush1.msra.mxu0 0.0
    %79 = vmatprep.subr.mxu0 0.0
    %80 = vmatpush1.msra.mxu0 0.0
    %81 = vmatprep.subr.mxu0 0.0
    %82 = vmatpush1.msra.mxu0 0.0
    %83 = vmatprep.subr.mxu0 0.0
    %84 = vmatpush1.msra.mxu0 0.0
    %85 = vmatprep.subr.mxu0 0.0
    %86 = vmatpush1.msra.mxu0 0.0
    %87 = vmatprep.subr.mxu0 0.0
    %88 = vmatpush1.msra.mxu0 0.0
    %89 = vmatprep.subr.mxu0 0.0
    %90 = vmatpush1.msra.mxu0 0.0
    %91 = vmatprep.subr.mxu0 0.0
    %92 = vmatpush1.msra.mxu0 0.0
    %93 = vmatprep.subr.mxu0 0.0
    %94 = vmatpush1.msra.mxu0 0.0
    %95 = vmatprep.subr.mxu0 0.0
    %96 = vmatpush1.msra.mxu0 0.0
    %97 = vmatprep.subr.mxu0 0.0
    %98 = vmatpush1.msra.mxu0 0.0
    %99 = vmatprep.subr.mxu0 0.0
    %100 = vmatpush1.msra.mxu0 0.0
    %101 = vmatprep.subr.mxu0 0.0
    %102 = vmatpush1.msra.mxu0 0.0
    %103 = vmatprep.subr.mxu0 0.0
    %104 = vmatpush1.msra.mxu0 0.0
    %105 = vmatprep.subr.mxu0 0.0
    %106 = vmatpush1.msra.mxu0 0.0
    %107 = vmatprep.subr.mxu0 0.0
    %108 = vmatpush1.msra.mxu0 0.0
    %109 = vmatprep.subr.mxu0 0.0
    %110 = vmatpush1.msra.mxu0 0.0
    %111 = vmatprep.subr.mxu0 0.0
    %112 = vmatpush1.msra.mxu0 0.0
    %113 = vmatprep.subr.mxu0 0.0
    %114 = vmatpush1.msra.mxu0 0.0
    %115 = vmatprep.subr.mxu0 0.0
    %116 = vmatpush1.msra.mxu0 0.0
    %117 = vmatprep.subr.mxu0 0.0
    %118 = vmatpush1.msra.mxu0 0.0
    %119 = vmatprep.subr.mxu0 0.0
    %120 = vmatpush1.msra.mxu0 0.0
    %121 = vmatprep.subr.mxu0 0.0
    %122 = vmatpush1.msra.mxu0 0.0
    %123 = vmatprep.subr.mxu0 0.0
    %124 = vmatpush1.msra.mxu0 0.0
    %125 = vmatprep.mubr.f32.mxu0 0.0
    %126 = vmatmul.mubr.f32.gmra.mrb[0].mxu0 %v59
    %v127 = vpop.f32.mrb[0].mxu0
    %v128 = vadd.f32 0.0, %v127
    %v129 = vpop.f32.mrb[0].mxu0
    %130 = vdwg.mxu0
    %v132 = vsel %vm57, %v51, 0
    %134 = vmatprep.subr.mxu0 0.0
    %135 = vmatpush1.msra.mxu0 %v52
    %136 = vmatprep.subr.mxu0 0.0
    %137 = vmatpush1.msra.mxu0 %v53
    %138 = vmatprep.subr.mxu0 0.0
    %139 = vmatpush1.msra.mxu0 0.0
    %140 = vmatprep.subr.mxu0 0.0
    %141 = vmatpush1.msra.mxu0 0.0
    %142 = vmatprep.subr.mxu0 0.0
    %143 = vmatpush1.msra.mxu0 0.0
    %144 = vmatprep.subr.mxu0 0.0
    %145 = vmatpush1.msra.mxu0 0.0
    %146 = vmatprep.subr.mxu0 0.0
    %147 = vmatpush1.msra.mxu0 0.0
    %148 = vmatprep.subr.mxu0 0.0
    %149 = vmatpush1.msra.mxu0 0.0
    %150 = vmatprep.subr.mxu0 0.0
    %151 = vmatpush1.msra.mxu0 0.0
    %152 = vmatprep.subr.mxu0 0.0
    %153 = vmatpush1.msra.mxu0 0.0
    %154 = vmatprep.subr.mxu0 0.0
    %155 = vmatpush1.msra.mxu0 0.0
    %156 = vmatprep.subr.mxu0 0.0
    %157 = vmatpush1.msra.mxu0 0.0
    %158 = vmatprep.subr.mxu0 0.0
    %159 = vmatpush1.msra.mxu0 0.0
    %160 = vmatprep.subr.mxu0 0.0
    %161 = vmatpush1.msra.mxu0 0.0
    %162 = vmatprep.subr.mxu0 0.0
    %163 = vmatpush1.msra.mxu0 0.0
    %164 = vmatprep.subr.mxu0 0.0
    %165 = vmatpush1.msra.mxu0 0.0
    %166 = vmatprep.subr.mxu0 0.0
    %167 = vmatpush1.msra.mxu0 0.0
    %168 = vmatprep.subr.mxu0 0.0
    %169 = vmatpush1.msra.mxu0 0.0
    %170 = vmatprep.subr.mxu0 0.0
    %171 = vmatpush1.msra.mxu0 0.0
    %172 = vmatprep.subr.mxu0 0.0
    %173 = vmatpush1.msra.mxu0 0.0
    %174 = vmatprep.subr.mxu0 0.0
    %175 = vmatpush1.msra.mxu0 0.0
    %176 = vmatprep.subr.mxu0 0.0
    %177 = vmatpush1.msra.mxu0 0.0
    %178 = vmatprep.subr.mxu0 0.0
    %179 = vmatpush1.msra.mxu0 0.0
    %180 = vmatprep.subr.mxu0 0.0
    %181 = vmatpush1.msra.mxu0 0.0
    %182 = vmatprep.subr.mxu0 0.0
    %183 = vmatpush1.msra.mxu0 0.0
    %184 = vmatprep.subr.mxu0 0.0
    %185 = vmatpush1.msra.mxu0 0.0
    %186 = vmatprep.subr.mxu0 0.0
    %187 = vmatpush1.msra.mxu0 0.0
    %188 = vmatprep.subr.mxu0 0.0
    %189 = vmatpush1.msra.mxu0 0.0
    %190 = vmatprep.subr.mxu0 0.0
    %191 = vmatpush1.msra.mxu0 0.0
    %192 = vmatprep.subr.mxu0 0.0
    %193 = vmatpush1.msra.mxu0 0.0
    %194 = vmatprep.subr.mxu0 0.0
    %195 = vmatpush1.msra.mxu0 0.0
    %196 = vmatprep.subr.mxu0 0.0
    %197 = vmatpush1.msra.mxu0 0.0
    %198 = vmatprep.mubr.f32.mxu0 0.0
    %199 = vmatmul.mubr.f32.gmra.mrb[0].mxu0 %v132
    %v200 = vpop.f32.mrb[0].mxu0
    %v201 = vadd.f32 %v128, %v200
    %v202 = vpop.f32.mrb[0].mxu0
    %203 = vdwg.mxu0
    %v204 = vld [vmem:[#allocation5] sm:$0x1]
    %v206 = vlaneseq
    %v207 = vshrl.u32 %v206, 7
    %v208 = vsub.s32 0, %v207
    %v209 = vrot.slane %v204, %v208
    %v211 = vadd.f32 %v201, %v209
    %v212 = vtanh.pop %v211
    %v213 = vld [vmem:[%s5] sm:$0xff]
    %v214 = vld [vmem:[%s5 + $0x8] sm:$0xff]
    %v215 = vld [vmem:[%s6] sm:$0x1]
    %v217 = vlaneseq
    %v218 = vshrl.u32 %v217, 7
    %v219 = vsub.s32 0, %v218
    %v220 = vrot.slane %v215, %v219
    %v223 = vsel %vm57, %v212, 0
    %225 = vmatprep.subr.mxu0 0.0
    %226 = vmatpush1.msra.mxu0 %v213
    %227 = vmatprep.subr.mxu0 0.0
    %228 = vmatpush1.msra.mxu0 %v214
    %229 = vmatprep.subr.mxu0 0.0
    %230 = vmatpush1.msra.mxu0 0.0
    %231 = vmatprep.subr.mxu0 0.0
    %232 = vmatpush1.msra.mxu0 0.0
    %233 = vmatprep.subr.mxu0 0.0
    %234 = vmatpush1.msra.mxu0 0.0
    %235 = vmatprep.subr.mxu0 0.0
    %236 = vmatpush1.msra.mxu0 0.0
    %237 = vmatprep.subr.mxu0 0.0
    %238 = vmatpush1.msra.mxu0 0.0
    %239 = vmatprep.subr.mxu0 0.0
    %240 = vmatpush1.msra.mxu0 0.0
    %241 = vmatprep.subr.mxu0 0.0
    %242 = vmatpush1.msra.mxu0 0.0
    %243 = vmatprep.subr.mxu0 0.0
    %244 = vmatpush1.msra.mxu0 0.0
    %245 = vmatprep.subr.mxu0 0.0
    %246 = vmatpush1.msra.mxu0 0.0
    %247 = vmatprep.subr.mxu0 0.0
    %248 = vmatpush1.msra.mxu0 0.0
    %249 = vmatprep.subr.mxu0 0.0
    %250 = vmatpush1.msra.mxu0 0.0
    %251 = vmatprep.subr.mxu0 0.0
    %252 = vmatpush1.msra.mxu0 0.0
    %253 = vmatprep.subr.mxu0 0.0
    %254 = vmatpush1.msra.mxu0 0.0
    %255 = vmatprep.subr.mxu0 0.0
    %256 = vmatpush1.msra.mxu0 0.0
    %257 = vmatprep.subr.mxu0 0.0
    %258 = vmatpush1.msra.mxu0 0.0
    %259 = vmatprep.subr.mxu0 0.0
    %260 = vmatpush1.msra.mxu0 0.0
    %261 = vmatprep.subr.mxu0 0.0
    %262 = vmatpush1.msra.mxu0 0.0
    %263 = vmatprep.subr.mxu0 0.0
    %264 = vmatpush1.msra.mxu0 0.0
    %265 = vmatprep.subr.mxu0 0.0
    %266 = vmatpush1.msra.mxu0 0.0
    %267 = vmatprep.subr.mxu0 0.0
    %268 = vmatpush1.msra.mxu0 0.0
    %269 = vmatprep.subr.mxu0 0.0
    %270 = vmatpush1.msra.mxu0 0.0
    %271 = vmatprep.subr.mxu0 0.0
    %272 = vmatpush1.msra.mxu0 0.0
    %273 = vmatprep.subr.mxu0 0.0
    %274 = vmatpush1.msra.mxu0 0.0
    %275 = vmatprep.subr.mxu0 0.0
    %276 = vmatpush1.msra.mxu0 0.0
    %277 = vmatprep.subr.mxu0 0.0
    %278 = vmatpush1.msra.mxu0 0.0
    %279 = vmatprep.subr.mxu0 0.0
    %280 = vmatpush1.msra.mxu0 0.0
    %281 = vmatprep.subr.mxu0 0.0
    %282 = vmatpush1.msra.mxu0 0.0
    %283 = vmatprep.subr.mxu0 0.0
    %284 = vmatpush1.msra.mxu0 0.0
    %285 = vmatprep.subr.mxu0 0.0
    %286 = vmatpush1.msra.mxu0 0.0
    %287 = vmatprep.subr.mxu0 0.0
    %288 = vmatpush1.msra.mxu0 0.0
    %289 = vmatprep.mubr.f32.mxu0 0.0
    %290 = vmatmul.mubr.f32.gmra.mrb[0].mxu0 %v223
    %v291 = vpop.f32.mrb[0].mxu0
    %v292 = vadd.f32 %v220, %v291
    %v293 = vpop.f32.mrb[0].mxu0
    %294 = vdwg.mxu0
    %vm295 = vcmask 58368
    %296 = vst.msk [vmem:[#allocation7] sm:$0x3] %vm295, %v292
    // Predicated region
    $region38: #{tpu_custom_call.1} parent=1 // pred_check
      _
    $region39: #{tpu_custom_call.1} parent=1 // pred_check_branch
      %298 = sbr.rel (0) target = $region41
    $region40: #{tpu_custom_call.1} parent=1 // pred_region
      %s300 = ssub.s32 32, 32
      %301 = vsyncadd [#allocation4], %s300
      %s303 = sshll.u32 [#allocation7], 4
      %s304 = int_to_ptr.vmem [resolvable:$true] %s303
      %306 = dma.vmem_to_hbm [thread:$0]  %s304, 32, %s7, [#allocation4]
    $region41: #{tpu_custom_call.1} parent=1 // pred_fallthru
      _
    // Predicated region
    $region42: #{tpu_custom_call.1} parent=1 // pred_check
      _
    $region43: #{tpu_custom_call.1} parent=1 // pred_check_branch
      %308 = sbr.rel (0) target = $region45
    $region44: #{tpu_custom_call.1} parent=1 // pred_region
      %309 = dma.done [#allocation4], 32
    $region45: #{tpu_custom_call.1} parent=1 // pred_fallthru
      _
    %310 = vsyncpa [#allocation3], 1
    %311 = vsyncpa [#allocation6], 1
    %312 = vsyncpa [#allocation4], 1

</llo_original>
